<compile_context>
chip_gen: v7x
topology: tpu7x:2x2x1
jax: 0.10.0
libtpu: 0.0.40
codegen_flags: <defaults>
</compile_context>

<pallas_src>
import jax
import jax.numpy as jnp
from jax.experimental import pallas as pl
from jax.experimental.pallas import tpu as pltpu


# ----------------------------------------------------------------------------
# Kernel
# ----------------------------------------------------------------------------
def dqn_kernel(x_ref,
               w1_ref, b1_ref,
               w2_ref, b2_ref,
               w3_ref, b3_ref,
               w4_ref, b4_ref,
               o_ref):
    # x arrives f32, cast to bf16 in-kernel (avoids a wrapper-side XLA pass).
    # MXU accumulates in f32; the bias+ReLU epilogue runs in the bias dtype
    # (bf16 on v6e/v7x, f32 on v5e) then recasts to bf16 for the next matmul.
    h = x_ref[...].astype(jnp.bfloat16)

    for w_ref, b_ref in ((w1_ref, b1_ref), (w2_ref, b2_ref), (w3_ref, b3_ref)):
        acc = jnp.dot(h, w_ref[...], preferred_element_type=jnp.float32)
        acc = acc.astype(b_ref.dtype) + b_ref[...]
        h = jnp.maximum(acc, 0).astype(jnp.bfloat16)

    # Final layer: keep the bias add / accumulation in f32, downcast only at
    # the store (output is bf16, lane-dense 128-wide).
    out = jnp.dot(h, w4_ref[...], preferred_element_type=jnp.float32) + b4_ref[...]
    o_ref[...] = out.astype(o_ref.dtype)


# ----------------------------------------------------------------------------
# Helpers / wrapper
# ----------------------------------------------------------------------------
def _round_up(a, m):
    return (a + m - 1) // m * m


def _is_v5():
    try:
        kind = jax.devices()[0].device_kind.lower()
    except Exception:
        return False
    return "v5" in kind


def init_params(key, observation_size, action_size):
    """PyTorch-style Linear init (U(-1/sqrt(in), 1/sqrt(in))), f32 master copy.
    Weights stored (in, out) == transposed PyTorch layout; biases (1, out)."""
    dims = [observation_size, 512, 256, 128, action_size]
    params = {}
    for li, (din, dout) in enumerate(zip(dims[:-1], dims[1:]), start=1):
        key, kw, kb = jax.random.split(key, 3)
        bound = 1.0 / jnp.sqrt(jnp.float32(din))
        params[f"w{li}"] = jax.random.uniform(kw, (din, dout), jnp.float32, -bound, bound)
        params[f"b{li}"] = jax.random.uniform(kb, (1, dout), jnp.float32, -bound, bound)
    return params


def prepare_params(params, *, epilogue_dtype=None):
    """One-time cast/pad of parameters for the kernel (do NOT call per forward).

    - weights -> bf16 (MXU feed)
    - hidden-layer biases -> epilogue dtype (bf16 on v6e/v7x, f32 on v5e)
    - last layer (w4, b4) zero-padded on the action dim up to a multiple of 128
      so the output store is an unmasked full-lane vst; b4 stays f32.
    """
    if epilogue_dtype is None:
        epilogue_dtype = jnp.float32 if _is_v5() else jnp.bfloat16

    action = params["w4"].shape[1]
    act_pad = _round_up(action, 128)

    prepared = {"action_size": action}
    for li in (1, 2, 3):
        prepared[f"w{li}"] = params[f"w{li}"].astype(jnp.bfloat16)
        prepared[f"b{li}"] = params[f"b{li}"].astype(epilogue_dtype)

    w4, b4 = params["w4"], params["b4"]
    if act_pad != action:
        w4 = jnp.pad(w4, ((0, 0), (0, act_pad - action)))
        b4 = jnp.pad(b4, ((0, 0), (0, act_pad - action)))
    prepared["w4"] = w4.astype(jnp.bfloat16)
    prepared["b4"] = b4.astype(jnp.float32)
    return prepared


def dqn_forward(x, prepared, *, batch_tile=512):
    """x: (B, obs) float32. prepared: output of prepare_params()."""
    B, obs = x.shape
    action = prepared["action_size"]
    act_pad = prepared["w4"].shape[1]

    # ---- batch tile selection -----------------------------------------------
    if B <= 64:
        # tiny / inference batch: single grid step.
        tile = _round_up(max(B, 8), 8)
    elif B <= batch_tile:
        # at least 2 grid steps so dual-TC chips (v7x) shard the batch axis.
        tile = _round_up((B + 1) // 2, 8)
    else:
        tile = batch_tile
    B_pad = _round_up(B, tile)
    if B_pad != B:
        # TODO(synk): could replace padding with a pl.when-masked last block.
        x = jnp.pad(x, ((0, B_pad - B), (0, 0)))
    grid = (B_pad // tile,)

    # Weights/biases get the same full block every step -> VMEM-resident.
    full = lambda arr: pl.BlockSpec(arr.shape, lambda i: (0, 0))

    out = pl.pallas_call(
        dqn_kernel,
        out_shape=jax.ShapeDtypeStruct((B_pad, act_pad), jnp.bfloat16),
        grid_spec=pltpu.PrefetchScalarGridSpec(
            num_scalar_prefetch=0,
            grid=grid,
            in_specs=[
                pl.BlockSpec((tile, obs), lambda i: (i, 0)),
                full(prepared["w1"]), full(prepared["b1"]),
                full(prepared["w2"]), full(prepared["b2"]),
                full(prepared["w3"]), full(prepared["b3"]),
                full(prepared["w4"]), full(prepared["b4"]),
            ],
            out_specs=pl.BlockSpec((tile, act_pad), lambda i: (i, 0)),
        ),
        compiler_params=pltpu.CompilerParams(
            dimension_semantics=("parallel",),
            vmem_limit_bytes=32 * 1024 * 1024,
        ),
    )(x,
      prepared["w1"], prepared["b1"],
      prepared["w2"], prepared["b2"],
      prepared["w3"], prepared["b3"],
      prepared["w4"], prepared["b4"])

    # strip batch padding + action-dim lane padding
    return out[:B, :action]


def dqn_reference(x, params):
    h = x
    for li in range(1, 4):
        h = jnp.maximum(h @ params[f"w{li}"] + params[f"b{li}"], 0.0)
    return h @ params["w4"] + params["b4"]


# ----------------------------------------------------------------------------
if __name__ == "__main__":
    observation_size = 32
    action_size = 8

    key = jax.random.PRNGKey(0)
    key, kx1, kx2 = jax.random.split(key, 3)
    params = init_params(key, observation_size, action_size)
    prepared = prepare_params(params)   # one-time cast/pad, not per forward

    # Small inference-style batch (single grid step).
    x_small = jax.random.normal(kx1, (8, observation_size), jnp.float32)
    out_small = jax.block_until_ready(dqn_forward(x_small, prepared))
    ref_small = dqn_reference(x_small, params)
    assert out_small.shape == (8, action_size), out_small.shape
    assert jnp.allclose(out_small.astype(jnp.float32), ref_small,
                        atol=5e-2, rtol=5e-2), "small-batch mismatch vs JAX reference"

    # Medium batch exercising the 2-step (dual-TC) path + batch padding.
    x_med = jax.random.normal(kx2, (200, observation_size), jnp.float32)
    out_med = jax.block_until_ready(dqn_forward(x_med, prepared))
    ref_med = dqn_reference(x_med, params)
    assert out_med.shape == (200, action_size), out_med.shape
    assert jnp.allclose(out_med.astype(jnp.float32), ref_med,
                        atol=5e-2, rtol=5e-2), "medium-batch mismatch vs JAX reference"

    print("KERNEL_OK")
</pallas_src>

<mosaic_0001>
module attributes {stable_mosaic.version = 11 : i64} {
  func.func @dqn_kernel(%arg0: i32, %arg1: memref<8x32xf32, #tpu.memory_space<vmem>>, %arg2: memref<32x512xbf16, #tpu.memory_space<vmem>>, %arg3: memref<1x512xbf16, #tpu.memory_space<vmem>>, %arg4: memref<512x256xbf16, #tpu.memory_space<vmem>>, %arg5: memref<1x256xbf16, #tpu.memory_space<vmem>>, %arg6: memref<256x128xbf16, #tpu.memory_space<vmem>>, %arg7: memref<1x128xbf16, #tpu.memory_space<vmem>>, %arg8: memref<128x128xbf16, #tpu.memory_space<vmem>>, %arg9: memref<1x128xf32, #tpu.memory_space<vmem>>, %arg10: memref<8x128xbf16, #tpu.memory_space<vmem>>) attributes {dimension_semantics = [#tpu.dimension_semantics<parallel>], iteration_bounds = array<i64: 1>, scalar_prefetch = 0 : i64, scratch_operands = 0 : i64, tpu.core_type = #tpu.core_type<tc>, window_params = [{transform_indices = @transform_0, window_bounds = array<i64: 8, 32>}, {pipeline_mode = #tpu.pipeline_mode<synchronous>, transform_indices = @transform_1, window_bounds = array<i64: 32, 512>}, {pipeline_mode = #tpu.pipeline_mode<synchronous>, transform_indices = @transform_2, window_bounds = array<i64: 1, 512>}, {pipeline_mode = #tpu.pipeline_mode<synchronous>, transform_indices = @transform_3, window_bounds = array<i64: 512, 256>}, {pipeline_mode = #tpu.pipeline_mode<synchronous>, transform_indices = @transform_4, window_bounds = array<i64: 1, 256>}, {pipeline_mode = #tpu.pipeline_mode<synchronous>, transform_indices = @transform_5, window_bounds = array<i64: 256, 128>}, {pipeline_mode = #tpu.pipeline_mode<synchronous>, transform_indices = @transform_6, window_bounds = array<i64: 1, 128>}, {pipeline_mode = #tpu.pipeline_mode<synchronous>, transform_indices = @transform_7, window_bounds = array<i64: 128, 128>}, {pipeline_mode = #tpu.pipeline_mode<synchronous>, transform_indices = @transform_8, window_bounds = array<i64: 1, 128>}, {transform_indices = @transform_9, window_bounds = array<i64: 8, 128>}]} {
    %c0 = arith.constant 0 : index
    %c0_0 = arith.constant 0 : index
    %0 = vector.load %arg1[%c0, %c0_0] : memref<8x32xf32, #tpu.memory_space<vmem>>, vector<8x32xf32>
    %1 = arith.truncf %0 : vector<8x32xf32> to vector<8x32xbf16>
    %c0_1 = arith.constant 0 : index
    %c0_2 = arith.constant 0 : index
    %2 = vector.load %arg2[%c0_1, %c0_2] : memref<32x512xbf16, #tpu.memory_space<vmem>>, vector<32x512xbf16>
    %cst = arith.constant dense<0.000000e+00> : vector<8x512xf32>
    %3 = tpu.matmul %1, %2, %cst {dimension_numbers = #tpu.dot_dimension_numbers<[1], [0], [0], [1], [0, 0, 1, 1], [], []>} : vector<8x32xbf16>, vector<32x512xbf16>, vector<8x512xf32> -> vector<8x512xf32>
    %4 = arith.truncf %3 : vector<8x512xf32> to vector<8x512xbf16>
    %c0_3 = arith.constant 0 : index
    %c0_4 = arith.constant 0 : index
    %5 = vector.load %arg3[%c0_3, %c0_4] : memref<1x512xbf16, #tpu.memory_space<vmem>>, vector<1x512xbf16>
    %6 = vector.broadcast %5 : vector<1x512xbf16> to vector<8x512xbf16>
    %7 = arith.addf %4, %6 : vector<8x512xbf16>
    %cst_5 = arith.constant 0.000000e+00 : bf16
    %8 = vector.broadcast %cst_5 : bf16 to vector<8x512xbf16>
    %9 = arith.maximumf %7, %8 : vector<8x512xbf16>
    %c0_6 = arith.constant 0 : index
    %c0_7 = arith.constant 0 : index
    %10 = vector.load %arg4[%c0_6, %c0_7] : memref<512x256xbf16, #tpu.memory_space<vmem>>, vector<512x256xbf16>
    %cst_8 = arith.constant dense<0.000000e+00> : vector<8x256xf32>
    %11 = tpu.matmul %9, %10, %cst_8 {dimension_numbers = #tpu.dot_dimension_numbers<[1], [0], [0], [1], [0, 0, 1, 1], [], []>} : vector<8x512xbf16>, vector<512x256xbf16>, vector<8x256xf32> -> vector<8x256xf32>
    %12 = arith.truncf %11 : vector<8x256xf32> to vector<8x256xbf16>
    %c0_9 = arith.constant 0 : index
    %c0_10 = arith.constant 0 : index
    %13 = vector.load %arg5[%c0_9, %c0_10] : memref<1x256xbf16, #tpu.memory_space<vmem>>, vector<1x256xbf16>
    %14 = vector.broadcast %13 : vector<1x256xbf16> to vector<8x256xbf16>
    %15 = arith.addf %12, %14 : vector<8x256xbf16>
    %cst_11 = arith.constant 0.000000e+00 : bf16
    %16 = vector.broadcast %cst_11 : bf16 to vector<8x256xbf16>
    %17 = arith.maximumf %15, %16 : vector<8x256xbf16>
    %c0_12 = arith.constant 0 : index
    %c0_13 = arith.constant 0 : index
    %18 = vector.load %arg6[%c0_12, %c0_13] : memref<256x128xbf16, #tpu.memory_space<vmem>>, vector<256x128xbf16>
    %cst_14 = arith.constant dense<0.000000e+00> : vector<8x128xf32>
    %19 = tpu.matmul %17, %18, %cst_14 {dimension_numbers = #tpu.dot_dimension_numbers<[1], [0], [0], [1], [0, 0, 1, 1], [], []>} : vector<8x256xbf16>, vector<256x128xbf16>, vector<8x128xf32> -> vector<8x128xf32>
    %20 = arith.truncf %19 : vector<8x128xf32> to vector<8x128xbf16>
    %c0_15 = arith.constant 0 : index
    %c0_16 = arith.constant 0 : index
    %21 = vector.load %arg7[%c0_15, %c0_16] : memref<1x128xbf16, #tpu.memory_space<vmem>>, vector<1x128xbf16>
    %22 = vector.broadcast %21 : vector<1x128xbf16> to vector<8x128xbf16>
    %23 = arith.addf %20, %22 : vector<8x128xbf16>
    %cst_17 = arith.constant 0.000000e+00 : bf16
    %24 = vector.broadcast %cst_17 : bf16 to vector<8x128xbf16>
    %25 = arith.maximumf %23, %24 : vector<8x128xbf16>
    %c0_18 = arith.constant 0 : index
    %c0_19 = arith.constant 0 : index
    %26 = vector.load %arg8[%c0_18, %c0_19] : memref<128x128xbf16, #tpu.memory_space<vmem>>, vector<128x128xbf16>
    %cst_20 = arith.constant dense<0.000000e+00> : vector<8x128xf32>
    %27 = tpu.matmul %25, %26, %cst_20 {dimension_numbers = #tpu.dot_dimension_numbers<[1], [0], [0], [1], [0, 0, 1, 1], [], []>} : vector<8x128xbf16>, vector<128x128xbf16>, vector<8x128xf32> -> vector<8x128xf32>
    %c0_21 = arith.constant 0 : index
    %c0_22 = arith.constant 0 : index
    %28 = vector.load %arg9[%c0_21, %c0_22] : memref<1x128xf32, #tpu.memory_space<vmem>>, vector<1x128xf32>
    %29 = vector.broadcast %28 : vector<1x128xf32> to vector<8x128xf32>
    %30 = arith.addf %27, %29 : vector<8x128xf32>
    %31 = arith.truncf %30 : vector<8x128xf32> to vector<8x128xbf16>
    %c0_23 = arith.constant 0 : index
    %c0_24 = arith.constant 0 : index
    %32 = vector.load %arg10[%c0_23, %c0_24] : memref<8x128xbf16, #tpu.memory_space<vmem>>, vector<8x128xbf16>
    tpu.vector_store %arg10[%c0_23, %c0_24], %31 {strides = array<i32>} : memref<8x128xbf16, #tpu.memory_space<vmem>>, vector<8x128xbf16>,
    return
  }
  func.func @transform_0(%arg0: i32) -> (i32, i32) {
    %c0_i32 = arith.constant 0 : i32
    %c0_i32_0 = arith.constant 0 : i32
    return %arg0, %c0_i32 : i32, i32
  }
  func.func @transform_1(%arg0: i32) -> (i32, i32) {
    %c0_i32 = arith.constant 0 : i32
    %c0_i32_0 = arith.constant 0 : i32
    %c0_i32_1 = arith.constant 0 : i32
    return %c0_i32, %c0_i32_0 : i32, i32
  }
  func.func @transform_2(%arg0: i32) -> (i32, i32) {
    %c0_i32 = arith.constant 0 : i32
    %c0_i32_0 = arith.constant 0 : i32
    %c0_i32_1 = arith.constant 0 : i32
    return %c0_i32, %c0_i32_0 : i32, i32
  }
  func.func @transform_3(%arg0: i32) -> (i32, i32) {
    %c0_i32 = arith.constant 0 : i32
    %c0_i32_0 = arith.constant 0 : i32
    %c0_i32_1 = arith.constant 0 : i32
    return %c0_i32, %c0_i32_0 : i32, i32
  }
  func.func @transform_4(%arg0: i32) -> (i32, i32) {
    %c0_i32 = arith.constant 0 : i32
    %c0_i32_0 = arith.constant 0 : i32
    %c0_i32_1 = arith.constant 0 : i32
    return %c0_i32, %c0_i32_0 : i32, i32
  }
  func.func @transform_5(%arg0: i32) -> (i32, i32) {
    %c0_i32 = arith.constant 0 : i32
    %c0_i32_0 = arith.constant 0 : i32
    %c0_i32_1 = arith.constant 0 : i32
    return %c0_i32, %c0_i32_0 : i32, i32
  }
  func.func @transform_6(%arg0: i32) -> (i32, i32) {
    %c0_i32 = arith.constant 0 : i32
    %c0_i32_0 = arith.constant 0 : i32
    %c0_i32_1 = arith.constant 0 : i32
    return %c0_i32, %c0_i32_0 : i32, i32
  }
  func.func @transform_7(%arg0: i32) -> (i32, i32) {
    %c0_i32 = arith.constant 0 : i32
    %c0_i32_0 = arith.constant 0 : i32
    %c0_i32_1 = arith.constant 0 : i32
    return %c0_i32, %c0_i32_0 : i32, i32
  }
  func.func @transform_8(%arg0: i32) -> (i32, i32) {
    %c0_i32 = arith.constant 0 : i32
    %c0_i32_0 = arith.constant 0 : i32
    %c0_i32_1 = arith.constant 0 : i32
    return %c0_i32, %c0_i32_0 : i32, i32
  }
  func.func @transform_9(%arg0: i32) -> (i32, i32) {
    %c0_i32 = arith.constant 0 : i32
    %c0_i32_0 = arith.constant 0 : i32
    return %arg0, %c0_i32 : i32, i32
  }
}

</mosaic_0001>

<llo_original>
// kernel: tpu_custom_call.1
$region0: #{tpu_custom_call.1}
  #allocation0 [shape = 'u32[]', space=smem, size = 0x4, offset = 0x4, fixed_abs, tag = 'smem constant byte address 0x4 - core index']
  #allocation1 [shape = 'u32[144,128]{1,0:T(1,128)}', space=vmem, size = 0x12000, scoped, tag = 'internal scratch']
  %s0 = inlined_call_operand.hbm [shape: f32[8,32], index: 0, kind: input, shape index: {}]
  %s1 = inlined_call_operand.hbm [shape: bf16[32,512], index: 1, kind: input, shape index: {}]
  %s2 = inlined_call_operand.vmem [shape: bf16[1,512], index: 2, kind: input, shape index: {}]
  %s3 = inlined_call_operand.hbm [shape: bf16[512,256], index: 3, kind: input, shape index: {}]
  %s4 = inlined_call_operand.vmem [shape: bf16[1,256], index: 4, kind: input, shape index: {}]
  %s5 = inlined_call_operand.hbm [shape: bf16[256,128], index: 5, kind: input, shape index: {}]
  %s6 = inlined_call_operand.vmem [shape: bf16[1,128], index: 6, kind: input, shape index: {}]
  %s7 = inlined_call_operand.hbm [shape: bf16[128,128], index: 7, kind: input, shape index: {}]
  %s8 = inlined_call_operand.vmem [shape: f32[1,128], index: 8, kind: input, shape index: {}]
  %s9 = inlined_call_operand.hbm [shape: bf16[8,128], index: 9, kind: output, shape index: {}]
  %s10 = sld [smem:[#allocation0]]
  $region66: #{tpu_custom_call.1} parent=0
    _
  %s12 = ssub.s32 1, %s10
  %s13 = scalar_select 0, %s12, %s10
  $region1: #{tpu_custom_call.1} parent=0
    #allocation2 [shape = 'u8[4096]{0}', space=vmem, size = 0x1000, scoped, tag = 'input window, operand 0, single buffered']
    #allocation3 [shape = 's32[1]{0}', space=sflag, size = 0x4, scoped, tag = 'scoped memory for tpu_custom_call.1']
    #allocation4 [shape = 's32[1]{0}', space=sflag, size = 0x4, scoped, tag = 'scoped memory for tpu_custom_call.1']
    #allocation5 [shape = 'u8[32768]{0}', space=vmem, size = 0x8000, scoped, tag = 'input window, operand 1, single buffered']
    #allocation6 [shape = 's32[1]{0}', space=sflag, size = 0x4, scoped, tag = 'scoped memory for tpu_custom_call.1']
    #allocation7 [shape = 'u8[262144]{0}', space=vmem, size = 0x40000, scoped, tag = 'input window, operand 3, single buffered']
    #allocation8 [shape = 'u8[65536]{0}', space=vmem, size = 0x10000, scoped, tag = 'input window, operand 5, single buffered']
    #allocation9 [shape = 's32[1]{0}', space=sflag, size = 0x4, scoped, tag = 'scoped memory for tpu_custom_call.1']
    #allocation10 [shape = 'u8[32768]{0}', space=vmem, size = 0x8000, scoped, tag = 'input window, operand 7, single buffered']
    #allocation11 [shape = 'u8[2048]{0}', space=vmem, size = 0x800, scoped, tag = 'output window, operand 0, single buffered']
    %14 = vsyncpa [#allocation3], 0
    %15 = vsyncpa [#allocation6], 0
    %16 = vsyncpa [#allocation9], 0
    %17 = vsyncpa [#allocation4], 0
    // Predicated region
    $region2: #{tpu_custom_call.1} parent=1 // pred_check
      _
    $region3: #{tpu_custom_call.1} parent=1 // pred_check_branch
      %19 = sbr.rel (0) target = $region5
    $region4: #{tpu_custom_call.1} parent=1 // pred_region
      %s21 = ssub.s32 128, 128
      %22 = vsyncadd [#allocation3], %s21
      %s24 = sshll.u32 [#allocation2], 4
      %s25 = int_to_ptr.vmem [resolvable:$true] %s24
      %27 = dma.hbm_to_vmem [thread:$0]  %s0, 128, %s25, [#allocation3]
    $region5: #{tpu_custom_call.1} parent=1 // pred_fallthru
      _
    // Predicated region
    $region6: #{tpu_custom_call.1} parent=1 // pred_check
      _
    $region7: #{tpu_custom_call.1} parent=1 // pred_check_branch
      %29 = sbr.rel (0) target = $region9
    $region8: #{tpu_custom_call.1} parent=1 // pred_region
      %s31 = ssub.s32 1024, 1024
      %32 = vsyncadd [#allocation6], %s31
      %s33 = sshll.u32 [#allocation5], 4
      %s34 = int_to_ptr.vmem [resolvable:$true] %s33
      %39 = dma.hbm_to_vmem [thread:$0]  %s1, 1024, %s34, [#allocation6], 256, 256, 16
    $region9: #{tpu_custom_call.1} parent=1 // pred_fallthru
      _
    // Predicated region
    $region10: #{tpu_custom_call.1} parent=1 // pred_check
      _
    $region11: #{tpu_custom_call.1} parent=1 // pred_check_branch
      %41 = sbr.rel (0) target = $region13
    $region12: #{tpu_custom_call.1} parent=1 // pred_region
      _
    $region13: #{tpu_custom_call.1} parent=1 // pred_fallthru
      _
    // Predicated region
    $region14: #{tpu_custom_call.1} parent=1 // pred_check
      _
    $region15: #{tpu_custom_call.1} parent=1 // pred_check_branch
      %43 = sbr.rel (0) target = $region17
    $region16: #{tpu_custom_call.1} parent=1 // pred_region
      %s45 = ssub.s32 8192, 8192
      %46 = vsyncadd [#allocation6], %s45
      %s47 = sshll.u32 [#allocation7], 4
      %s48 = int_to_ptr.vmem [resolvable:$true] %s47
      %53 = dma.hbm_to_vmem [thread:$0]  %s3, 8192, %s48, [#allocation6], 128, 128, 8
    $region17: #{tpu_custom_call.1} parent=1 // pred_fallthru
      _
    // Predicated region
    $region18: #{tpu_custom_call.1} parent=1 // pred_check
      _
    $region19: #{tpu_custom_call.1} parent=1 // pred_check_branch
      %55 = sbr.rel (0) target = $region21
    $region20: #{tpu_custom_call.1} parent=1 // pred_region
      _
    $region21: #{tpu_custom_call.1} parent=1 // pred_fallthru
      _
    // Predicated region
    $region22: #{tpu_custom_call.1} parent=1 // pred_check
      _
    $region23: #{tpu_custom_call.1} parent=1 // pred_check_branch
      %57 = sbr.rel (0) target = $region25
    $region24: #{tpu_custom_call.1} parent=1 // pred_region
      %s59 = ssub.s32 2048, 2048
      %60 = vsyncadd [#allocation9], %s59
      %s61 = sshll.u32 [#allocation8], 4
      %s62 = int_to_ptr.vmem [resolvable:$true] %s61
      %67 = dma.hbm_to_vmem [thread:$0]  %s5, 2048, %s62, [#allocation9], 64, 64, 4
    $region25: #{tpu_custom_call.1} parent=1 // pred_fallthru
      _
    // Predicated region
    $region26: #{tpu_custom_call.1} parent=1 // pred_check
      _
    $region27: #{tpu_custom_call.1} parent=1 // pred_check_branch
      %69 = sbr.rel (0) target = $region29
    $region28: #{tpu_custom_call.1} parent=1 // pred_region
      _
    $region29: #{tpu_custom_call.1} parent=1 // pred_fallthru
      _
    // Predicated region
    $region30: #{tpu_custom_call.1} parent=1 // pred_check
      _
    $region31: #{tpu_custom_call.1} parent=1 // pred_check_branch
      %71 = sbr.rel (0) target = $region33
    $region32: #{tpu_custom_call.1} parent=1 // pred_region
      %s73 = ssub.s32 1024, 1024
      %74 = vsyncadd [#allocation9], %s73
      %s75 = sshll.u32 [#allocation10], 4
      %s76 = int_to_ptr.vmem [resolvable:$true] %s75
      %81 = dma.hbm_to_vmem [thread:$0]  %s7, 1024, %s76, [#allocation9], 64, 64, 4
    $region33: #{tpu_custom_call.1} parent=1 // pred_fallthru
      _
    // Predicated region
    $region34: #{tpu_custom_call.1} parent=1 // pred_check
      _
    $region35: #{tpu_custom_call.1} parent=1 // pred_check_branch
      %83 = sbr.rel (0) target = $region37
    $region36: #{tpu_custom_call.1} parent=1 // pred_region
      _
    $region37: #{tpu_custom_call.1} parent=1 // pred_fallthru
      _
    // Predicated region
    $region38: #{tpu_custom_call.1} parent=1 // pred_check
      _
    $region39: #{tpu_custom_call.1} parent=1 // pred_check_branch
      %85 = sbr.rel (0) target = $region41
    $region40: #{tpu_custom_call.1} parent=1 // pred_region
      %86 = dma.done [#allocation3], 128
    $region41: #{tpu_custom_call.1} parent=1 // pred_fallthru
      _
    // Predicated region
    $region42: #{tpu_custom_call.1} parent=1 // pred_check
      _
    $region43: #{tpu_custom_call.1} parent=1 // pred_check_branch
      %88 = sbr.rel (0) target = $region45
    $region44: #{tpu_custom_call.1} parent=1 // pred_region
      %89 = dma.done [#allocation6], 1024
    $region45: #{tpu_custom_call.1} parent=1 // pred_fallthru
      _
    // Predicated region
    $region46: #{tpu_custom_call.1} parent=1 // pred_check
      _
    $region47: #{tpu_custom_call.1} parent=1 // pred_check_branch
      %91 = sbr.rel (0) target = $region49
    $region48: #{tpu_custom_call.1} parent=1 // pred_region
      %92 = dma.done [#allocation6], 8192
    $region49: #{tpu_custom_call.1} parent=1 // pred_fallthru
      _
    // Predicated region
    $region50: #{tpu_custom_call.1} parent=1 // pred_check
      _
    $region51: #{tpu_custom_call.1} parent=1 // pred_check_branch
      %94 = sbr.rel (0) target = $region53
    $region52: #{tpu_custom_call.1} parent=1 // pred_region
      %95 = dma.done [#allocation9], 2048
    $region53: #{tpu_custom_call.1} parent=1 // pred_fallthru
      _
    // Predicated region
    $region54: #{tpu_custom_call.1} parent=1 // pred_check
      _
    $region55: #{tpu_custom_call.1} parent=1 // pred_check_branch
      %97 = sbr.rel (0) target = $region57
    $region56: #{tpu_custom_call.1} parent=1 // pred_region
      %98 = dma.done [#allocation9], 1024
    $region57: #{tpu_custom_call.1} parent=1 // pred_fallthru
      _
    %v100 = vld [vmem:[#allocation2] sm:$0xff]
    %v101 = vpack.c.bf16 %v100, %v100
    %v102 = vld [vmem:[#allocation5] sm:$0xff]
    %v103 = vld [vmem:[#allocation5 + $0x8] sm:$0xff]
    %v104 = vld [vmem:[#allocation5 + $0x10] sm:$0xff]
    %v105 = vld [vmem:[#allocation5 + $0x18] sm:$0xff]
    %v106 = vld [vmem:[#allocation5 + $0x20] sm:$0xff]
    %v107 = vld [vmem:[#allocation5 + $0x28] sm:$0xff]
    %v108 = vld [vmem:[#allocation5 + $0x30] sm:$0xff]
    %v109 = vld [vmem:[#allocation5 + $0x38] sm:$0xff]
    %v118 = vunpack.c.l.b16 %v102
    %v119 = vunpack.c.h.b16 %v102
    %v120 = vunpack.c.l.b16 %v103
    %v121 = vunpack.c.h.b16 %v103
    %v122 = vunpack.c.l.b16 %v104
    %v123 = vunpack.c.h.b16 %v104
    %v124 = vunpack.c.l.b16 %v105
    %v125 = vunpack.c.h.b16 %v105
    %v126 = vunpack.c.l.b16 %v106
    %v127 = vunpack.c.h.b16 %v106
    %v128 = vunpack.c.l.b16 %v107
    %v129 = vunpack.c.h.b16 %v107
    %v130 = vunpack.c.l.b16 %v108
    %v131 = vunpack.c.h.b16 %v108
    %v132 = vunpack.c.l.b16 %v109
    %v133 = vunpack.c.h.b16 %v109
    %v134 = vpack.c.b16 %v122, %v118
    %v135 = vpack.c.b16 %v123, %v119
    %v136 = vpack.c.b16 %v124, %v120
    %v137 = vpack.c.b16 %v125, %v121
    %v138 = vpack.c.b16 %v130, %v126
    %v139 = vpack.c.b16 %v131, %v127
    %v140 = vpack.c.b16 %v132, %v128
    %v141 = vpack.c.b16 %v133, %v129
    %vm150 = vcmask 261120
    %v152 = vsel %vm150, %v101, 0
    %154 = vmatprep.subr.bf16.mxu0 %v135
    %155 = vmatpush1.bf16.msra.mxu0 %v134
    %156 = vmatprep.subr.bf16.mxu0 %v139
    %157 = vmatpush1.bf16.msra.mxu0 %v138
    %158 = vmatprep.subr.bf16.mxu0 0
    %159 = vmatpush1.bf16.msra.mxu0 0
    %160 = vmatprep.subr.bf16.mxu0 0
    %161 = vmatpush1.bf16.msra.mxu0 0
    %162 = vmatprep.subr.bf16.mxu0 0
    %163 = vmatpush1.bf16.msra.mxu0 0
    %164 = vmatprep.subr.bf16.mxu0 0
    %165 = vmatpush1.bf16.msra.mxu0 0
    %166 = vmatprep.subr.bf16.mxu0 0
    %167 = vmatpush1.bf16.msra.mxu0 0
    %168 = vmatprep.subr.bf16.mxu0 0
    %169 = vmatpush1.bf16.msra.mxu0 0
    %170 = vmatprep.subr.bf16.mxu0 0
    %171 = vmatpush1.bf16.msra.mxu0 0
    %172 = vmatprep.subr.bf16.mxu0 0
    %173 = vmatpush1.bf16.msra.mxu0 0
    %174 = vmatprep.subr.bf16.mxu0 0
    %175 = vmatpush1.bf16.msra.mxu0 0
    %176 = vmatprep.subr.bf16.mxu0 0
    %177 = vmatpush1.bf16.msra.mxu0 0
    %178 = vmatprep.subr.bf16.mxu0 0
    %179 = vmatpush1.bf16.msra.mxu0 0
    %180 = vmatprep.subr.bf16.mxu0 0
    %181 = vmatpush1.bf16.msra.mxu0 0
    %182 = vmatprep.subr.bf16.mxu0 0
    %183 = vmatpush1.bf16.msra.mxu0 0
    %184 = vmatprep.subr.bf16.mxu0 0
    %185 = vmatpush1.bf16.msra.mxu0 0
    %186 = vmatprep.mubr.bf16.mxu0 0
    %187 = vmatmul.mubr.bf16.gmra.mrb[0].mxu0 %v152
    %v188 = vpop.f32.mrb[0].mxu0
    %v189 = vadd.f32 0.0, %v188
    %v190 = vpop.f32.mrb[0].mxu0
    %v191 = vadd.f32 0.0, %v190
    %v192 = vpop.f32.mrb[0].mxu0
    %v193 = vpop.f32.mrb[0].mxu0
    %194 = vdwg.mxu0
    %195 = vmatprep.subr.bf16.mxu0 %v137
    %196 = vmatpush1.bf16.msra.mxu0 %v136
    %197 = vmatprep.subr.bf16.mxu0 %v141
    %198 = vmatpush1.bf16.msra.mxu0 %v140
    %199 = vmatprep.subr.bf16.mxu0 0
    %200 = vmatpush1.bf16.msra.mxu0 0
    %201 = vmatprep.subr.bf16.mxu0 0
    %202 = vmatpush1.bf16.msra.mxu0 0
    %203 = vmatprep.subr.bf16.mxu0 0
    %204 = vmatpush1.bf16.msra.mxu0 0
    %205 = vmatprep.subr.bf16.mxu0 0
    %206 = vmatpush1.bf16.msra.mxu0 0
    %207 = vmatprep.subr.bf16.mxu0 0
    %208 = vmatpush1.bf16.msra.mxu0 0
    %209 = vmatprep.subr.bf16.mxu0 0
    %210 = vmatpush1.bf16.msra.mxu0 0
    %211 = vmatprep.subr.bf16.mxu0 0
    %212 = vmatpush1.bf16.msra.mxu0 0
    %213 = vmatprep.subr.bf16.mxu0 0
    %214 = vmatpush1.bf16.msra.mxu0 0
    %215 = vmatprep.subr.bf16.mxu0 0
    %216 = vmatpush1.bf16.msra.mxu0 0
    %217 = vmatprep.subr.bf16.mxu0 0
    %218 = vmatpush1.bf16.msra.mxu0 0
    %219 = vmatprep.subr.bf16.mxu0 0
    %220 = vmatpush1.bf16.msra.mxu0 0
    %221 = vmatprep.subr.bf16.mxu0 0
    %222 = vmatpush1.bf16.msra.mxu0 0
    %223 = vmatprep.subr.bf16.mxu0 0
    %224 = vmatpush1.bf16.msra.mxu0 0
    %225 = vmatprep.subr.bf16.mxu0 0
    %226 = vmatpush1.bf16.msra.mxu0 0
    %227 = vmatprep.mubr.bf16.mxu0 0
    %228 = vmatmul.mubr.bf16.gmra.mrb[0].mxu0 %v152
    %v229 = vpop.f32.mrb[0].mxu0
    %v230 = vadd.f32 0.0, %v229
    %v231 = vpop.f32.mrb[0].mxu0
    %v232 = vadd.f32 0.0, %v231
    %v233 = vpop.f32.mrb[0].mxu0
    %v234 = vpop.f32.mrb[0].mxu0
    %235 = vdwg.mxu0
    %v236 = vpack.c.bf16 %v189, %v189
    %v237 = vpack.c.bf16 %v191, %v191
    %v238 = vpack.c.bf16 %v230, %v230
    %v239 = vpack.c.bf16 %v232, %v232
    %v240 = vld [vmem:[%s2] sm:$0xf]
    %v243 = vunpack.c.l.s4 1966171168
    %v244 = vunpack.c.0.s8 %v243
    %v245 = vlaneseq
    %v246 = vshrl.u32 %v245, 7
    %v247 = vsub.s32 %v244, %v246
    %v248 = vrot.slane %v240, %v247
    %v249 = vcombine.high %v248, %v248
    %v251 = vunpack.c.l.s4 1966171168
    %v252 = vunpack.c.0.s8 %v251
    %v253 = vlaneseq
    %v254 = vshrl.u32 %v253, 7
    %v255 = vsub.s32 %v252, %v254
    %v256 = vrot.slane %v248, %v255
    %v258 = vunpack.c.l.s4 1966171168
    %v259 = vunpack.c.0.s8 %v258
    %v260 = vlaneseq
    %v261 = vshrl.u32 %v260, 7
    %v262 = vsub.s32 %v259, %v261
    %v263 = vrot.slane %v249, %v262
    %v264 = vcombine.high %v256, %v256
    %v265 = vcombine.high %v263, %v263
    %v267 = vpack.i.b16 %v256, %v256
    %v269 = vlaneseq
    %v270 = vshrl.u32 %v269, 7
    %v271 = vsub.s32 0, %v270
    %v272 = vrot.slane %v267, %v271
    %v274 = vpack.i.b16 %v263, %v263
    %v276 = vlaneseq
    %v277 = vshrl.u32 %v276, 7
    %v278 = vsub.s32 0, %v277
    %v279 = vrot.slane %v274, %v278
    %v281 = vpack.i.b16 %v264, %v264
    %v283 = vlaneseq
    %v284 = vshrl.u32 %v283, 7
    %v285 = vsub.s32 0, %v284
    %v286 = vrot.slane %v281, %v285
    %v288 = vpack.i.b16 %v265, %v265
    %v290 = vlaneseq
    %v291 = vshrl.u32 %v290, 7
    %v292 = vsub.s32 0, %v291
    %v293 = vrot.slane %v288, %v292
    %v294 = vadd.bf16 %v236, %v272
    %v295 = vadd.bf16 %v237, %v279
    %v296 = vadd.bf16 %v238, %v286
    %v297 = vadd.bf16 %v239, %v293
    %v298 = vmax.bf16 %v294, 0
    %v299 = vmax.bf16 %v295, 0
    %v300 = vmax.bf16 %v296, 0
    %v301 = vmax.bf16 %v297, 0
    %v302 = vld [vmem:[#allocation7] sm:$0xff]
    %v303 = vld [vmem:[#allocation7 + $0x8] sm:$0xff]
    %v304 = vld [vmem:[#allocation7 + $0x10] sm:$0xff]
    %v305 = vld [vmem:[#allocation7 + $0x18] sm:$0xff]
    %v306 = vld [vmem:[#allocation7 + $0x20] sm:$0xff]
    %v307 = vld [vmem:[#allocation7 + $0x28] sm:$0xff]
    %v308 = vld [vmem:[#allocation7 + $0x30] sm:$0xff]
    %v309 = vld [vmem:[#allocation7 + $0x38] sm:$0xff]
    %v310 = vld [vmem:[#allocation7 + $0x40] sm:$0xff]
    %v311 = vld [vmem:[#allocation7 + $0x48] sm:$0xff]
    %v312 = vld [vmem:[#allocation7 + $0x50] sm:$0xff]
    %v313 = vld [vmem:[#allocation7 + $0x58] sm:$0xff]
    %v314 = vld [vmem:[#allocation7 + $0x60] sm:$0xff]
    %v315 = vld [vmem:[#allocation7 + $0x68] sm:$0xff]
    %v316 = vld [vmem:[#allocation7 + $0x70] sm:$0xff]
    %v317 = vld [vmem:[#allocation7 + $0x78] sm:$0xff]
    %v318 = vld [vmem:[#allocation7 + $0x80] sm:$0xff]
    %v319 = vld [vmem:[#allocation7 + $0x88] sm:$0xff]
    %v320 = vld [vmem:[#allocation7 + $0x90] sm:$0xff]
    %v321 = vld [vmem:[#allocation7 + $0x98] sm:$0xff]
    %v322 = vld [vmem:[#allocation7 + $0xa0] sm:$0xff]
    %v323 = vld [vmem:[#allocation7 + $0xa8] sm:$0xff]
    %v324 = vld [vmem:[#allocation7 + $0xb0] sm:$0xff]
    %v325 = vld [vmem:[#allocation7 + $0xb8] sm:$0xff]
    %v326 = vld [vmem:[#allocation7 + $0xc0] sm:$0xff]
    %v327 = vld [vmem:[#allocation7 + $0xc8] sm:$0xff]
    %v328 = vld [vmem:[#allocation7 + $0xd0] sm:$0xff]
    %v329 = vld [vmem:[#allocation7 + $0xd8] sm:$0xff]
    %v330 = vld [vmem:[#allocation7 + $0xe0] sm:$0xff]
    %v331 = vld [vmem:[#allocation7 + $0xe8] sm:$0xff]
    %v332 = vld [vmem:[#allocation7 + $0xf0] sm:$0xff]
    %v333 = vld [vmem:[#allocation7 + $0xf8] sm:$0xff]
    %v334 = vld [vmem:[#allocation7 + $0x100] sm:$0xff]
    %v335 = vld [vmem:[#allocation7 + $0x108] sm:$0xff]
    %v336 = vld [vmem:[#allocation7 + $0x110] sm:$0xff]
    %v337 = vld [vmem:[#allocation7 + $0x118] sm:$0xff]
    %v338 = vld [vmem:[#allocation7 + $0x120] sm:$0xff]
    %v339 = vld [vmem:[#allocation7 + $0x128] sm:$0xff]
    %v340 = vld [vmem:[#allocation7 + $0x130] sm:$0xff]
    %v341 = vld [vmem:[#allocation7 + $0x138] sm:$0xff]
    %v342 = vld [vmem:[#allocation7 + $0x140] sm:$0xff]
    %v343 = vld [vmem:[#allocation7 + $0x148] sm:$0xff]
    %v344 = vld [vmem:[#allocation7 + $0x150] sm:$0xff]
    %v345 = vld [vmem:[#allocation7 + $0x158] sm:$0xff]
    %v346 = vld [vmem:[#allocation7 + $0x160] sm:$0xff]
    %v347 = vld [vmem:[#allocation7 + $0x168] sm:$0xff]
    %v348 = vld [vmem:[#allocation7 + $0x170] sm:$0xff]
    %v349 = vld [vmem:[#allocation7 + $0x178] sm:$0xff]
    %v350 = vld [vmem:[#allocation7 + $0x180] sm:$0xff]
    %v351 = vld [vmem:[#allocation7 + $0x188] sm:$0xff]
    %v352 = vld [vmem:[#allocation7 + $0x190] sm:$0xff]
    %v353 = vld [vmem:[#allocation7 + $0x198] sm:$0xff]
    %v354 = vld [vmem:[#allocation7 + $0x1a0] sm:$0xff]
    %v355 = vld [vmem:[#allocation7 + $0x1a8] sm:$0xff]
    %v356 = vld [vmem:[#allocation7 + $0x1b0] sm:$0xff]
    %v357 = vld [vmem:[#allocation7 + $0x1b8] sm:$0xff]
    %v358 = vld [vmem:[#allocation7 + $0x1c0] sm:$0xff]
    %v359 = vld [vmem:[#allocation7 + $0x1c8] sm:$0xff]
    %v360 = vld [vmem:[#allocation7 + $0x1d0] sm:$0xff]
    %v361 = vld [vmem:[#allocation7 + $0x1d8] sm:$0xff]
    %v362 = vld [vmem:[#allocation7 + $0x1e0] sm:$0xff]
    %v363 = vld [vmem:[#allocation7 + $0x1e8] sm:$0xff]
    %v364 = vld [vmem:[#allocation7 + $0x1f0] sm:$0xff]
    %v365 = vld [vmem:[#allocation7 + $0x1f8] sm:$0xff]
    %v430 = vunpack.c.l.b16 %v302
    %v431 = vunpack.c.h.b16 %v302
    %v432 = vunpack.c.l.b16 %v303
    %v433 = vunpack.c.h.b16 %v303
    %v434 = vunpack.c.l.b16 %v304
    %v435 = vunpack.c.h.b16 %v304
    %v436 = vunpack.c.l.b16 %v305
    %v437 = vunpack.c.h.b16 %v305
    %v438 = vunpack.c.l.b16 %v306
    %v439 = vunpack.c.h.b16 %v306
    %v440 = vunpack.c.l.b16 %v307
    %v441 = vunpack.c.h.b16 %v307
    %v442 = vunpack.c.l.b16 %v308
    %v443 = vunpack.c.h.b16 %v308
    %v444 = vunpack.c.l.b16 %v309
    %v445 = vunpack.c.h.b16 %v309
    %v446 = vunpack.c.l.b16 %v310
    %v447 = vunpack.c.h.b16 %v310
    %v448 = vunpack.c.l.b16 %v311
    %v449 = vunpack.c.h.b16 %v311
    %v450 = vunpack.c.l.b16 %v312
    %v451 = vunpack.c.h.b16 %v312
    %v452 = vunpack.c.l.b16 %v313
    %v453 = vunpack.c.h.b16 %v313
    %v454 = vunpack.c.l.b16 %v314
    %v455 = vunpack.c.h.b16 %v314
    %v456 = vunpack.c.l.b16 %v315
    %v457 = vunpack.c.h.b16 %v315
    %v458 = vunpack.c.l.b16 %v316
    %v459 = vunpack.c.h.b16 %v316
    %v460 = vunpack.c.l.b16 %v317
    %v461 = vunpack.c.h.b16 %v317
    %v462 = vunpack.c.l.b16 %v318
    %v463 = vunpack.c.h.b16 %v318
    %v464 = vunpack.c.l.b16 %v319
    %v465 = vunpack.c.h.b16 %v319
    %v466 = vunpack.c.l.b16 %v320
    %v467 = vunpack.c.h.b16 %v320
    %v468 = vunpack.c.l.b16 %v321
    %v469 = vunpack.c.h.b16 %v321
    %v470 = vunpack.c.l.b16 %v322
    %v471 = vunpack.c.h.b16 %v322
    %v472 = vunpack.c.l.b16 %v323
    %v473 = vunpack.c.h.b16 %v323
    %v474 = vunpack.c.l.b16 %v324
    %v475 = vunpack.c.h.b16 %v324
    %v476 = vunpack.c.l.b16 %v325
    %v477 = vunpack.c.h.b16 %v325
    %v478 = vunpack.c.l.b16 %v326
    %v479 = vunpack.c.h.b16 %v326
    %v480 = vunpack.c.l.b16 %v327
    %v481 = vunpack.c.h.b16 %v327
    %v482 = vunpack.c.l.b16 %v328
    %v483 = vunpack.c.h.b16 %v328
    %v484 = vunpack.c.l.b16 %v329
    %v485 = vunpack.c.h.b16 %v329
    %v486 = vunpack.c.l.b16 %v330
    %v487 = vunpack.c.h.b16 %v330
    %v488 = vunpack.c.l.b16 %v331
    %v489 = vunpack.c.h.b16 %v331
    %v490 = vunpack.c.l.b16 %v332
    %v491 = vunpack.c.h.b16 %v332
    %v492 = vunpack.c.l.b16 %v333
    %v493 = vunpack.c.h.b16 %v333
    %v494 = vunpack.c.l.b16 %v334
    %v495 = vunpack.c.h.b16 %v334
    %v496 = vunpack.c.l.b16 %v335
    %v497 = vunpack.c.h.b16 %v335
    %v498 = vunpack.c.l.b16 %v336
    %v499 = vunpack.c.h.b16 %v336
    %v500 = vunpack.c.l.b16 %v337
    %v501 = vunpack.c.h.b16 %v337
    %v502 = vunpack.c.l.b16 %v338
    %v503 = vunpack.c.h.b16 %v338
    %v504 = vunpack.c.l.b16 %v339
    %v505 = vunpack.c.h.b16 %v339
    %v506 = vunpack.c.l.b16 %v340
    %v507 = vunpack.c.h.b16 %v340
    %v508 = vunpack.c.l.b16 %v341
    %v509 = vunpack.c.h.b16 %v341
    %v510 = vunpack.c.l.b16 %v342
    %v511 = vunpack.c.h.b16 %v342
    %v512 = vunpack.c.l.b16 %v343
    %v513 = vunpack.c.h.b16 %v343
    %v514 = vunpack.c.l.b16 %v344
    %v515 = vunpack.c.h.b16 %v344
    %v516 = vunpack.c.l.b16 %v345
    %v517 = vunpack.c.h.b16 %v345
    %v518 = vunpack.c.l.b16 %v346
    %v519 = vunpack.c.h.b16 %v346
    %v520 = vunpack.c.l.b16 %v347
    %v521 = vunpack.c.h.b16 %v347
    %v522 = vunpack.c.l.b16 %v348
    %v523 = vunpack.c.h.b16 %v348
    %v524 = vunpack.c.l.b16 %v349
    %v525 = vunpack.c.h.b16 %v349
    %v526 = vunpack.c.l.b16 %v350
    %v527 = vunpack.c.h.b16 %v350
    %v528 = vunpack.c.l.b16 %v351
    %v529 = vunpack.c.h.b16 %v351
    %v530 = vunpack.c.l.b16 %v352
    %v531 = vunpack.c.h.b16 %v352
    %v532 = vunpack.c.l.b16 %v353
    %v533 = vunpack.c.h.b16 %v353
    %v534 = vunpack.c.l.b16 %v354
    %v535 = vunpack.c.h.b16 %v354
    %v536 = vunpack.c.l.b16 %v355
    %v537 = vunpack.c.h.b16 %v355
    %v538 = vunpack.c.l.b16 %v356
    %v539 = vunpack.c.h.b16 %v356
    %v540 = vunpack.c.l.b16 %v357
    %v541 = vunpack.c.h.b16 %v357
    %v542 = vunpack.c.l.b16 %v358
    %v543 = vunpack.c.h.b16 %v358
    %v544 = vunpack.c.l.b16 %v359
    %v545 = vunpack.c.h.b16 %v359
    %v546 = vunpack.c.l.b16 %v360
    %v547 = vunpack.c.h.b16 %v360
    %v548 = vunpack.c.l.b16 %v361
    %v549 = vunpack.c.h.b16 %v361
    %v550 = vunpack.c.l.b16 %v362
    %v551 = vunpack.c.h.b16 %v362
    %v552 = vunpack.c.l.b16 %v363
    %v553 = vunpack.c.h.b16 %v363
    %v554 = vunpack.c.l.b16 %v364
    %v555 = vunpack.c.h.b16 %v364
    %v556 = vunpack.c.l.b16 %v365
    %v557 = vunpack.c.h.b16 %v365
    %v558 = vpack.c.b16 %v432, %v430
    %v559 = vpack.c.b16 %v433, %v431
    %v560 = vpack.c.b16 %v436, %v434
    %v561 = vpack.c.b16 %v437, %v435
    %v562 = vpack.c.b16 %v440, %v438
    %v563 = vpack.c.b16 %v441, %v439
    %v564 = vpack.c.b16 %v444, %v442
    %v565 = vpack.c.b16 %v445, %v443
    %v566 = vpack.c.b16 %v448, %v446
    %v567 = vpack.c.b16 %v449, %v447
    %v568 = vpack.c.b16 %v452, %v450
    %v569 = vpack.c.b16 %v453, %v451
    %v570 = vpack.c.b16 %v456, %v454
    %v571 = vpack.c.b16 %v457, %v455
    %v572 = vpack.c.b16 %v460, %v458
    %v573 = vpack.c.b16 %v461, %v459
    %v574 = vpack.c.b16 %v464, %v462
    %v575 = vpack.c.b16 %v465, %v463
    %v576 = vpack.c.b16 %v468, %v466
    %v577 = vpack.c.b16 %v469, %v467
    %v578 = vpack.c.b16 %v472, %v470
    %v579 = vpack.c.b16 %v473, %v471
    %v580 = vpack.c.b16 %v476, %v474
    %v581 = vpack.c.b16 %v477, %v475
    %v582 = vpack.c.b16 %v480, %v478
    %v583 = vpack.c.b16 %v481, %v479
    %v584 = vpack.c.b16 %v484, %v482
    %v585 = vpack.c.b16 %v485, %v483
    %v586 = vpack.c.b16 %v488, %v486
    %v587 = vpack.c.b16 %v489, %v487
    %v588 = vpack.c.b16 %v492, %v490
    %v589 = vpack.c.b16 %v493, %v491
    %v590 = vpack.c.b16 %v496, %v494
    %v591 = vpack.c.b16 %v497, %v495
    %v592 = vpack.c.b16 %v500, %v498
    %v593 = vpack.c.b16 %v501, %v499
    %v594 = vpack.c.b16 %v504, %v502
    %v595 = vpack.c.b16 %v505, %v503
    %v596 = vpack.c.b16 %v508, %v506
    %v597 = vpack.c.b16 %v509, %v507
    %v598 = vpack.c.b16 %v512, %v510
    %v599 = vpack.c.b16 %v513, %v511
    %v600 = vpack.c.b16 %v516, %v514
    %v601 = vpack.c.b16 %v517, %v515
    %v602 = vpack.c.b16 %v520, %v518
    %v603 = vpack.c.b16 %v521, %v519
    %v604 = vpack.c.b16 %v524, %v522
    %v605 = vpack.c.b16 %v525, %v523
    %v606 = vpack.c.b16 %v528, %v526
    %v607 = vpack.c.b16 %v529, %v527
    %v608 = vpack.c.b16 %v532, %v530
    %v609 = vpack.c.b16 %v533, %v531
    %v610 = vpack.c.b16 %v536, %v534
    %v611 = vpack.c.b16 %v537, %v535
    %v612 = vpack.c.b16 %v540, %v538
    %v613 = vpack.c.b16 %v541, %v539
    %v614 = vpack.c.b16 %v544, %v542
    %v615 = vpack.c.b16 %v545, %v543
    %v616 = vpack.c.b16 %v548, %v546
    %v617 = vpack.c.b16 %v549, %v547
    %v618 = vpack.c.b16 %v552, %v550
    %v619 = vpack.c.b16 %v553, %v551
    %v620 = vpack.c.b16 %v556, %v554
    %v621 = vpack.c.b16 %v557, %v555
    %686 = vmatprep.subr.bf16.mxu0 %v559
    %687 = vmatpush1.bf16.msra.mxu0 %v558
    %688 = vmatprep.subr.bf16.mxu0 %v561
    %689 = vmatpush1.bf16.msra.mxu0 %v560
    %690 = vmatprep.subr.bf16.mxu0 %v563
    %691 = vmatpush1.bf16.msra.mxu0 %v562
    %692 = vmatprep.subr.bf16.mxu0 %v565
    %693 = vmatpush1.bf16.msra.mxu0 %v564
    %694 = vmatprep.subr.bf16.mxu0 %v567
    %695 = vmatpush1.bf16.msra.mxu0 %v566
    %696 = vmatprep.subr.bf16.mxu0 %v569
    %697 = vmatpush1.bf16.msra.mxu0 %v568
    %698 = vmatprep.subr.bf16.mxu0 %v571
    %699 = vmatpush1.bf16.msra.mxu0 %v570
    %700 = vmatprep.subr.bf16.mxu0 %v573
    %701 = vmatpush1.bf16.msra.mxu0 %v572
    %702 = vmatprep.subr.bf16.mxu0 %v575
    %703 = vmatpush1.bf16.msra.mxu0 %v574
    %704 = vmatprep.subr.bf16.mxu0 %v577
    %705 = vmatpush1.bf16.msra.mxu0 %v576
    %706 = vmatprep.subr.bf16.mxu0 %v579
    %707 = vmatpush1.bf16.msra.mxu0 %v578
    %708 = vmatprep.subr.bf16.mxu0 %v581
    %709 = vmatpush1.bf16.msra.mxu0 %v580
    %710 = vmatprep.subr.bf16.mxu0 %v583
    %711 = vmatpush1.bf16.msra.mxu0 %v582
    %712 = vmatprep.subr.bf16.mxu0 %v585
    %713 = vmatpush1.bf16.msra.mxu0 %v584
    %714 = vmatprep.subr.bf16.mxu0 %v587
    %715 = vmatpush1.bf16.msra.mxu0 %v586
    %716 = vmatprep.subr.bf16.mxu0 %v589
    %717 = vmatpush1.bf16.msra.mxu0 %v588
    %718 = vmatprep.mubr.bf16.mxu0 %v299
    %719 = vmatmul.mubr.bf16.gmra.mrb[0].mxu0 %v298
    %v720 = vpop.f32.mrb[0].mxu0
    %v721 = vadd.f32 0.0, %v720
    %v722 = vpop.f32.mrb[0].mxu0
    %v723 = vadd.f32 0.0, %v722
    %v724 = vpop.f32.mrb[0].mxu0
    %v725 = vpop.f32.mrb[0].mxu0
    %726 = vdwg.mxu0
    %727 = vmatprep.subr.bf16.mxu0 %v591
    %728 = vmatpush1.bf16.msra.mxu0 %v590
    %729 = vmatprep.subr.bf16.mxu0 %v593
    %730 = vmatpush1.bf16.msra.mxu0 %v592
    %731 = vmatprep.subr.bf16.mxu0 %v595
    %732 = vmatpush1.bf16.msra.mxu0 %v594
    %733 = vmatprep.subr.bf16.mxu0 %v597
    %734 = vmatpush1.bf16.msra.mxu0 %v596
    %735 = vmatprep.subr.bf16.mxu0 %v599
    %736 = vmatpush1.bf16.msra.mxu0 %v598
    %737 = vmatprep.subr.bf16.mxu0 %v601
    %738 = vmatpush1.bf16.msra.mxu0 %v600
    %739 = vmatprep.subr.bf16.mxu0 %v603
    %740 = vmatpush1.bf16.msra.mxu0 %v602
    %741 = vmatprep.subr.bf16.mxu0 %v605
    %742 = vmatpush1.bf16.msra.mxu0 %v604
    %743 = vmatprep.subr.bf16.mxu0 %v607
    %744 = vmatpush1.bf16.msra.mxu0 %v606
    %745 = vmatprep.subr.bf16.mxu0 %v609
    %746 = vmatpush1.bf16.msra.mxu0 %v608
    %747 = vmatprep.subr.bf16.mxu0 %v611
    %748 = vmatpush1.bf16.msra.mxu0 %v610
    %749 = vmatprep.subr.bf16.mxu0 %v613
    %750 = vmatpush1.bf16.msra.mxu0 %v612
    %751 = vmatprep.subr.bf16.mxu0 %v615
    %752 = vmatpush1.bf16.msra.mxu0 %v614
    %753 = vmatprep.subr.bf16.mxu0 %v617
    %754 = vmatpush1.bf16.msra.mxu0 %v616
    %755 = vmatprep.subr.bf16.mxu0 %v619
    %756 = vmatpush1.bf16.msra.mxu0 %v618
    %757 = vmatprep.subr.bf16.mxu0 %v621
    %758 = vmatpush1.bf16.msra.mxu0 %v620
    %759 = vmatprep.mubr.bf16.mxu0 %v301
    %760 = vmatmul.mubr.bf16.gmra.mrb[0].mxu0 %v300
    %v761 = vpop.f32.mrb[0].mxu0
    %v762 = vadd.f32 %v721, %v761
    %v763 = vpop.f32.mrb[0].mxu0
    %v764 = vadd.f32 %v723, %v763
    %v765 = vpop.f32.mrb[0].mxu0
    %v766 = vpop.f32.mrb[0].mxu0
    %767 = vdwg.mxu0
    %v768 = vpack.c.bf16 %v762, %v762
    %v769 = vpack.c.bf16 %v764, %v764
    %v770 = vld [vmem:[%s4] sm:$0x3]
    %v773 = vunpack.c.l.s4 1966171168
    %v774 = vunpack.c.0.s8 %v773
    %v775 = vlaneseq
    %v776 = vshrl.u32 %v775, 7
    %v777 = vsub.s32 %v774, %v776
    %v778 = vrot.slane %v770, %v777
    %v779 = vcombine.high %v778, %v778
    %v781 = vunpack.c.l.s4 1966171168
    %v782 = vunpack.c.0.s8 %v781
    %v783 = vlaneseq
    %v784 = vshrl.u32 %v783, 7
    %v785 = vsub.s32 %v782, %v784
    %v786 = vrot.slane %v778, %v785
    %v788 = vunpack.c.l.s4 1966171168
    %v789 = vunpack.c.0.s8 %v788
    %v790 = vlaneseq
    %v791 = vshrl.u32 %v790, 7
    %v792 = vsub.s32 %v789, %v791
    %v793 = vrot.slane %v779, %v792
    %v795 = vpack.i.b16 %v786, %v786
    %v797 = vlaneseq
    %v798 = vshrl.u32 %v797, 7
    %v799 = vsub.s32 0, %v798
    %v800 = vrot.slane %v795, %v799
    %v802 = vpack.i.b16 %v793, %v793
    %v804 = vlaneseq
    %v805 = vshrl.u32 %v804, 7
    %v806 = vsub.s32 0, %v805
    %v807 = vrot.slane %v802, %v806
    %v808 = vadd.bf16 %v768, %v800
    %v809 = vadd.bf16 %v769, %v807
    %v810 = vmax.bf16 %v808, 0
    %v811 = vmax.bf16 %v809, 0
    %v812 = vld [vmem:[#allocation8] sm:$0xf]
    %v813 = vld [vmem:[#allocation8 + $0x4] sm:$0xf]
    %v814 = vld [vmem:[#allocation8 + $0x8] sm:$0xf]
    %v815 = vld [vmem:[#allocation8 + $0xc] sm:$0xf]
    %v816 = vld [vmem:[#allocation8 + $0x10] sm:$0xf]
    %v817 = vld [vmem:[#allocation8 + $0x14] sm:$0xf]
    %v818 = vld [vmem:[#allocation8 + $0x18] sm:$0xf]
    %v819 = vld [vmem:[#allocation8 + $0x1c] sm:$0xf]
    %v820 = vld [vmem:[#allocation8 + $0x20] sm:$0xf]
    %v821 = vld [vmem:[#allocation8 + $0x24] sm:$0xf]
    %v822 = vld [vmem:[#allocation8 + $0x28] sm:$0xf]
    %v823 = vld [vmem:[#allocation8 + $0x2c] sm:$0xf]
    %v824 = vld [vmem:[#allocation8 + $0x30] sm:$0xf]
    %v825 = vld [vmem:[#allocation8 + $0x34] sm:$0xf]
    %v826 = vld [vmem:[#allocation8 + $0x38] sm:$0xf]
    %v827 = vld [vmem:[#allocation8 + $0x3c] sm:$0xf]
    %v828 = vld [vmem:[#allocation8 + $0x40] sm:$0xf]
    %v829 = vld [vmem:[#allocation8 + $0x44] sm:$0xf]
    %v830 = vld [vmem:[#allocation8 + $0x48] sm:$0xf]
    %v831 = vld [vmem:[#allocation8 + $0x4c] sm:$0xf]
    %v832 = vld [vmem:[#allocation8 + $0x50] sm:$0xf]
    %v833 = vld [vmem:[#allocation8 + $0x54] sm:$0xf]
    %v834 = vld [vmem:[#allocation8 + $0x58] sm:$0xf]
    %v835 = vld [vmem:[#allocation8 + $0x5c] sm:$0xf]
    %v836 = vld [vmem:[#allocation8 + $0x60] sm:$0xf]
    %v837 = vld [vmem:[#allocation8 + $0x64] sm:$0xf]
    %v838 = vld [vmem:[#allocation8 + $0x68] sm:$0xf]
    %v839 = vld [vmem:[#allocation8 + $0x6c] sm:$0xf]
    %v840 = vld [vmem:[#allocation8 + $0x70] sm:$0xf]
    %v841 = vld [vmem:[#allocation8 + $0x74] sm:$0xf]
    %v842 = vld [vmem:[#allocation8 + $0x78] sm:$0xf]
    %v843 = vld [vmem:[#allocation8 + $0x7c] sm:$0xf]
    %v876 = vunpack.c.l.b16 %v812
    %v877 = vunpack.c.l.b16 %v813
    %v878 = vunpack.c.l.b16 %v814
    %v879 = vunpack.c.l.b16 %v815
    %v880 = vunpack.c.l.b16 %v816
    %v881 = vunpack.c.l.b16 %v817
    %v882 = vunpack.c.l.b16 %v818
    %v883 = vunpack.c.l.b16 %v819
    %v884 = vunpack.c.l.b16 %v820
    %v885 = vunpack.c.l.b16 %v821
    %v886 = vunpack.c.l.b16 %v822
    %v887 = vunpack.c.l.b16 %v823
    %v888 = vunpack.c.l.b16 %v824
    %v889 = vunpack.c.l.b16 %v825
    %v890 = vunpack.c.l.b16 %v826
    %v891 = vunpack.c.l.b16 %v827
    %v892 = vunpack.c.l.b16 %v828
    %v893 = vunpack.c.l.b16 %v829
    %v894 = vunpack.c.l.b16 %v830
    %v895 = vunpack.c.l.b16 %v831
    %v896 = vunpack.c.l.b16 %v832
    %v897 = vunpack.c.l.b16 %v833
    %v898 = vunpack.c.l.b16 %v834
    %v899 = vunpack.c.l.b16 %v835
    %v900 = vunpack.c.l.b16 %v836
    %v901 = vunpack.c.l.b16 %v837
    %v902 = vunpack.c.l.b16 %v838
    %v903 = vunpack.c.l.b16 %v839
    %v904 = vunpack.c.l.b16 %v840
    %v905 = vunpack.c.l.b16 %v841
    %v906 = vunpack.c.l.b16 %v842
    %v907 = vunpack.c.l.b16 %v843
    %v908 = vpack.c.b16 %v877, %v876
    %v909 = vpack.c.b16 %v879, %v878
    %v910 = vpack.c.b16 %v881, %v880
    %v911 = vpack.c.b16 %v883, %v882
    %v912 = vpack.c.b16 %v885, %v884
    %v913 = vpack.c.b16 %v887, %v886
    %v914 = vpack.c.b16 %v889, %v888
    %v915 = vpack.c.b16 %v891, %v890
    %v916 = vpack.c.b16 %v893, %v892
    %v917 = vpack.c.b16 %v895, %v894
    %v918 = vpack.c.b16 %v897, %v896
    %v919 = vpack.c.b16 %v899, %v898
    %v920 = vpack.c.b16 %v901, %v900
    %v921 = vpack.c.b16 %v903, %v902
    %v922 = vpack.c.b16 %v905, %v904
    %v923 = vpack.c.b16 %v907, %v906
    %940 = vmatprep.subr.bf16.mxu0 0
    %941 = vmatpush1.bf16.msra.mxu0 %v908
    %942 = vmatprep.subr.bf16.mxu0 0
    %943 = vmatpush1.bf16.msra.mxu0 %v909
    %944 = vmatprep.subr.bf16.mxu0 0
    %945 = vmatpush1.bf16.msra.mxu0 %v910
    %946 = vmatprep.subr.bf16.mxu0 0
    %947 = vmatpush1.bf16.msra.mxu0 %v911
    %948 = vmatprep.subr.bf16.mxu0 0
    %949 = vmatpush1.bf16.msra.mxu0 %v912
    %950 = vmatprep.subr.bf16.mxu0 0
    %951 = vmatpush1.bf16.msra.mxu0 %v913
    %952 = vmatprep.subr.bf16.mxu0 0
    %953 = vmatpush1.bf16.msra.mxu0 %v914
    %954 = vmatprep.subr.bf16.mxu0 0
    %955 = vmatpush1.bf16.msra.mxu0 %v915
    %956 = vmatprep.subr.bf16.mxu0 0
    %957 = vmatpush1.bf16.msra.mxu0 %v916
    %958 = vmatprep.subr.bf16.mxu0 0
    %959 = vmatpush1.bf16.msra.mxu0 %v917
    %960 = vmatprep.subr.bf16.mxu0 0
    %961 = vmatpush1.bf16.msra.mxu0 %v918
    %962 = vmatprep.subr.bf16.mxu0 0
    %963 = vmatpush1.bf16.msra.mxu0 %v919
    %964 = vmatprep.subr.bf16.mxu0 0
    %965 = vmatpush1.bf16.msra.mxu0 %v920
    %966 = vmatprep.subr.bf16.mxu0 0
    %967 = vmatpush1.bf16.msra.mxu0 %v921
    %968 = vmatprep.subr.bf16.mxu0 0
    %969 = vmatpush1.bf16.msra.mxu0 %v922
    %970 = vmatprep.subr.bf16.mxu0 0
    %971 = vmatpush1.bf16.msra.mxu0 %v923
    %972 = vmatprep.mubr.bf16.mxu0 %v811
    %973 = vmatmul.mubr.bf16.gmra.mrb[0].mxu0 %v810
    %v974 = vpop.f32.mrb[0].mxu0
    %v975 = vadd.f32 0.0, %v974
    %v976 = vpop.f32.mrb[0].mxu0
    %v977 = vpop.f32.mrb[0].mxu0
    %v978 = vpop.f32.mrb[0].mxu0
    %979 = vdwg.mxu0
    %v980 = vpack.c.bf16 %v975, %v975
    %v981 = vld [vmem:[%s6] sm:$0x1]
    %v983 = vpack.i.b16 %v981, %v981
    %v985 = vlaneseq
    %v986 = vshrl.u32 %v985, 7
    %v987 = vsub.s32 0, %v986
    %v988 = vrot.slane %v983, %v987
    %v989 = vadd.bf16 %v980, %v988
    %v990 = vmax.bf16 %v989, 0
    %v991 = vld [vmem:[#allocation10] sm:$0xf]
    %v992 = vld [vmem:[#allocation10 + $0x4] sm:$0xf]
    %v993 = vld [vmem:[#allocation10 + $0x8] sm:$0xf]
    %v994 = vld [vmem:[#allocation10 + $0xc] sm:$0xf]
    %v995 = vld [vmem:[#allocation10 + $0x10] sm:$0xf]
    %v996 = vld [vmem:[#allocation10 + $0x14] sm:$0xf]
    %v997 = vld [vmem:[#allocation10 + $0x18] sm:$0xf]
    %v998 = vld [vmem:[#allocation10 + $0x1c] sm:$0xf]
    %v999 = vld [vmem:[#allocation10 + $0x20] sm:$0xf]
    %v1000 = vld [vmem:[#allocation10 + $0x24] sm:$0xf]
    %v1001 = vld [vmem:[#allocation10 + $0x28] sm:$0xf]
    %v1002 = vld [vmem:[#allocation10 + $0x2c] sm:$0xf]
    %v1003 = vld [vmem:[#allocation10 + $0x30] sm:$0xf]
    %v1004 = vld [vmem:[#allocation10 + $0x34] sm:$0xf]
    %v1005 = vld [vmem:[#allocation10 + $0x38] sm:$0xf]
    %v1006 = vld [vmem:[#allocation10 + $0x3c] sm:$0xf]
    %v1007 = vld [vmem:[%s8] sm:$0x1]
    %v1009 = vlaneseq
    %v1010 = vshrl.u32 %v1009, 7
    %v1011 = vsub.s32 0, %v1010
    %v1012 = vrot.slane %v1007, %v1011
    %v1030 = vunpack.c.l.b16 %v991
    %v1031 = vunpack.c.l.b16 %v992
    %v1032 = vunpack.c.l.b16 %v993
    %v1033 = vunpack.c.l.b16 %v994
    %v1034 = vunpack.c.l.b16 %v995
    %v1035 = vunpack.c.l.b16 %v996
    %v1036 = vunpack.c.l.b16 %v997
    %v1037 = vunpack.c.l.b16 %v998
    %v1038 = vunpack.c.l.b16 %v999
    %v1039 = vunpack.c.l.b16 %v1000
    %v1040 = vunpack.c.l.b16 %v1001
    %v1041 = vunpack.c.l.b16 %v1002
    %v1042 = vunpack.c.l.b16 %v1003
    %v1043 = vunpack.c.l.b16 %v1004
    %v1044 = vunpack.c.l.b16 %v1005
    %v1045 = vunpack.c.l.b16 %v1006
    %v1046 = vpack.c.b16 %v1031, %v1030
    %v1047 = vpack.c.b16 %v1033, %v1032
    %v1048 = vpack.c.b16 %v1035, %v1034
    %v1049 = vpack.c.b16 %v1037, %v1036
    %v1050 = vpack.c.b16 %v1039, %v1038
    %v1051 = vpack.c.b16 %v1041, %v1040
    %v1052 = vpack.c.b16 %v1043, %v1042
    %v1053 = vpack.c.b16 %v1045, %v1044
    %1062 = vmatprep.subr.bf16.mxu0 0
    %1063 = vmatpush1.bf16.msra.mxu0 %v1046
    %1064 = vmatprep.subr.bf16.mxu0 0
    %1065 = vmatpush1.bf16.msra.mxu0 %v1047
    %1066 = vmatprep.subr.bf16.mxu0 0
    %1067 = vmatpush1.bf16.msra.mxu0 %v1048
    %1068 = vmatprep.subr.bf16.mxu0 0
    %1069 = vmatpush1.bf16.msra.mxu0 %v1049
    %1070 = vmatprep.subr.bf16.mxu0 0
    %1071 = vmatpush1.bf16.msra.mxu0 %v1050
    %1072 = vmatprep.subr.bf16.mxu0 0
    %1073 = vmatpush1.bf16.msra.mxu0 %v1051
    %1074 = vmatprep.subr.bf16.mxu0 0
    %1075 = vmatpush1.bf16.msra.mxu0 %v1052
    %1076 = vmatprep.subr.bf16.mxu0 0
    %1077 = vmatpush1.bf16.msra.mxu0 %v1053
    %1078 = vmatprep.subr.bf16.mxu0 0
    %1079 = vmatpush1.bf16.msra.mxu0 0
    %1080 = vmatprep.subr.bf16.mxu0 0
    %1081 = vmatpush1.bf16.msra.mxu0 0
    %1082 = vmatprep.subr.bf16.mxu0 0
    %1083 = vmatpush1.bf16.msra.mxu0 0
    %1084 = vmatprep.subr.bf16.mxu0 0
    %1085 = vmatpush1.bf16.msra.mxu0 0
    %1086 = vmatprep.subr.bf16.mxu0 0
    %1087 = vmatpush1.bf16.msra.mxu0 0
    %1088 = vmatprep.subr.bf16.mxu0 0
    %1089 = vmatpush1.bf16.msra.mxu0 0
    %1090 = vmatprep.subr.bf16.mxu0 0
    %1091 = vmatpush1.bf16.msra.mxu0 0
    %1092 = vmatprep.subr.bf16.mxu0 0
    %1093 = vmatpush1.bf16.msra.mxu0 0
    %1094 = vmatprep.mubr.bf16.mxu0 0
    %1095 = vmatmul.mubr.bf16.gmra.mrb[0].mxu0 %v990
    %v1096 = vpop.f32.mrb[0].mxu0
    %v1097 = vadd.f32 %v1012, %v1096
    %v1098 = vpop.f32.mrb[0].mxu0
    %v1099 = vpop.f32.mrb[0].mxu0
    %v1100 = vpop.f32.mrb[0].mxu0
    %1101 = vdwg.mxu0
    %v1102 = vpack.c.bf16 %v1097, %v1097
    %1103 = vst [vmem:[#allocation11] sm:$0xf] %v1102
    // Predicated region
    $region58: #{tpu_custom_call.1} parent=1 // pred_check
      _
    $region59: #{tpu_custom_call.1} parent=1 // pred_check_branch
      %1105 = sbr.rel (0) target = $region61
    $region60: #{tpu_custom_call.1} parent=1 // pred_region
      %s1107 = ssub.s32 64, 64
      %1108 = vsyncadd [#allocation4], %s1107
      %s1110 = sshll.u32 [#allocation11], 4
      %s1111 = int_to_ptr.vmem [resolvable:$true] %s1110
      %1113 = dma.vmem_to_hbm [thread:$0]  %s1111, 64, %s9, [#allocation4]
    $region61: #{tpu_custom_call.1} parent=1 // pred_fallthru
      _
    // Predicated region
    $region62: #{tpu_custom_call.1} parent=1 // pred_check
      _
    $region63: #{tpu_custom_call.1} parent=1 // pred_check_branch
      %1115 = sbr.rel (0) target = $region65
    $region64: #{tpu_custom_call.1} parent=1 // pred_region
      %1116 = dma.done [#allocation4], 64
    $region65: #{tpu_custom_call.1} parent=1 // pred_fallthru
      _
    %1117 = vsyncpa [#allocation3], 1
    %1118 = vsyncpa [#allocation6], 1
    %1119 = vsyncpa [#allocation9], 1
    %1120 = vsyncpa [#allocation4], 1

</llo_original>
